<compile_context>
chip_gen: v7x
topology: tpu7x:2x2x1
jax: 0.10.0
libtpu: 0.0.40
codegen_flags: <defaults>
</compile_context>

<pallas_src>
import jax
import jax.numpy as jnp
from jax.experimental import pallas as pl
from jax.experimental.pallas import tpu as pltpu


def _round_up(x, m):
    return (x + m - 1) // m * m


def mlp_decoder_kernel(z_ref, w1_ref, b1_ref, w2_ref, b2_ref, o_ref):
    # Hidden layer: (tile_b, d_latent) @ (d_latent, d_hidden_p), f32 accumulate.
    h = jnp.dot(z_ref[...], w1_ref[...], preferred_element_type=jnp.float32)
    h = jnp.maximum(h + b1_ref[...][0:1, :], 0.0)          # bias + ReLU in f32
    # Output layer: cast back to the MXU dtype, accumulate in f32.
    h = h.astype(w2_ref.dtype)
    out = jnp.dot(h, w2_ref[...], preferred_element_type=jnp.float32)
    out = out + b2_ref[...][0:1, :]
    o_ref[...] = out.astype(o_ref.dtype)


def mlp_decoder(z, w1, b1, w2, b2, *, tile_b=None, compute_dtype=jnp.bfloat16):
    """out = relu(z @ w1 + b1) @ w2 + b2, fused in one Pallas kernel.

    z:  [B, d_latent]
    w1: [d_latent, d_hidden]   b1: [d_hidden] or [1, d_hidden]
    w2: [d_hidden, d_input]    b2: [d_input]  or [1, d_input]
    """
    out_dtype = z.dtype
    B, d_latent = z.shape
    d_hidden = w1.shape[1]
    d_input = w2.shape[1]
    b1 = b1.reshape(1, d_hidden).astype(jnp.float32)
    b2 = b2.reshape(1, d_input).astype(jnp.float32)

    # Lane-pad the hidden dim to 128 so h vregs / the 2nd GEMM's K are dense.
    d_hidden_p = _round_up(d_hidden, 128)
    if d_hidden_p != d_hidden:
        pad = d_hidden_p - d_hidden
        w1 = jnp.pad(w1, ((0, 0), (0, pad)))
        b1 = jnp.pad(b1, ((0, 0), (0, pad)))
        w2 = jnp.pad(w2, ((0, pad), (0, 0)))

    # MXU dtype for the matmul operands (accumulation stays f32 in-kernel).
    w1 = w1.astype(compute_dtype)
    w2 = w2.astype(compute_dtype)
    z_c = z.astype(compute_dtype)

    # Replicate biases across 8 sublanes -> full (8, d) VMEM tiles.
    b1 = jnp.broadcast_to(b1, (8, d_hidden_p))
    b2 = jnp.broadcast_to(b2, (8, d_input))

    # Rows per grid step: multiple of the sublane tile for compute_dtype,
    # large enough to amortize per-step overhead, capped at 512 so large
    # batches still produce multiple "parallel" steps (keeps both v7x TCs busy).
    min_rows = 16 if jnp.dtype(compute_dtype).itemsize == 2 else 8
    if tile_b is None:
        tile_b = min(_round_up(B, min_rows), 512)
    tile_b = max(min_rows, _round_up(tile_b, min_rows))

    B_p = _round_up(B, tile_b)
    if B_p != B:
        z_c = jnp.pad(z_c, ((0, B_p - B), (0, 0)))
    grid = (B_p // tile_b,)

    # Explicit VMEM budget: (double-buffered) weights + biases + streaming
    # z/out tiles + intermediate h, with headroom; clamp to v7x's 64 MiB.
    cbytes = jnp.dtype(compute_dtype).itemsize
    est = 2 * (w1.size * cbytes + w2.size * cbytes + (b1.size + b2.size) * 4
               + tile_b * d_latent * cbytes + tile_b * d_input * 4)
    est += 4 * tile_b * (d_hidden_p + d_input) * 4
    vmem_limit = int(min(64 << 20, max(16 << 20, 2 * est)))

    out = pl.pallas_call(
        mlp_decoder_kernel,
        out_shape=jax.ShapeDtypeStruct((B_p, d_input), out_dtype),
        grid_spec=pltpu.PrefetchScalarGridSpec(
            num_scalar_prefetch=0,
            grid=grid,
            in_specs=[
                pl.BlockSpec((tile_b, d_latent), lambda i: (i, 0)),
                pl.BlockSpec((d_latent, d_hidden_p), lambda i: (0, 0)),
                pl.BlockSpec((8, d_hidden_p), lambda i: (0, 0)),
                pl.BlockSpec((d_hidden_p, d_input), lambda i: (0, 0)),
                pl.BlockSpec((8, d_input), lambda i: (0, 0)),
            ],
            out_specs=pl.BlockSpec((tile_b, d_input), lambda i: (i, 0)),
        ),
        compiler_params=pltpu.CompilerParams(
            dimension_semantics=("parallel",),
            vmem_limit_bytes=vmem_limit,
        ),
    )(z_c, w1, b1, w2, b2)

    return out[:B] if B_p != B else out


def mlp_decoder_ref(z, w1, b1, w2, b2):
    h = jnp.maximum(z @ w1 + b1.reshape(1, -1), 0.0)
    return h @ w2 + b2.reshape(1, -1)


if __name__ == "__main__":
    # MLPDecoder(d_input=128, d_hidden=64, d_latent=32) at batch 16.
    d_input, d_hidden, d_latent = 128, 64, 32
    B = 16

    key = jax.random.PRNGKey(0)
    kz, kw1, kb1, kw2, kb2 = jax.random.split(key, 5)

    # Deterministic normal_(mean=0, std=0.1) init; weights stored transposed
    # ([in, out]) so z @ W + b == PyTorch's z @ W.T + b.
    z = jax.random.normal(kz, (B, d_latent), dtype=jnp.float32)
    w1 = 0.1 * jax.random.normal(kw1, (d_latent, d_hidden), dtype=jnp.float32)
    b1 = 0.1 * jax.random.normal(kb1, (d_hidden,), dtype=jnp.float32)
    w2 = 0.1 * jax.random.normal(kw2, (d_hidden, d_input), dtype=jnp.float32)
    b2 = 0.1 * jax.random.normal(kb2, (d_input,), dtype=jnp.float32)

    ref = mlp_decoder_ref(z, w1, b1, w2, b2)

    # Fast path: bf16 MXU operands, f32 accumulation.
    out = jax.block_until_ready(mlp_decoder(z, w1, b1, w2, b2))
    assert out.shape == (B, d_input)
    assert jnp.allclose(out, ref, atol=2e-2, rtol=2e-2), "bf16 path mismatch"

    # Full-precision path: tight agreement with the f32 reference.
    out_f32 = jax.block_until_ready(
        mlp_decoder(z, w1, b1, w2, b2, compute_dtype=jnp.float32))
    assert jnp.allclose(out_f32, ref, atol=1e-5, rtol=1e-5), "f32 path mismatch"

    print("KERNEL_OK")
</pallas_src>

<mosaic_0001>
module attributes {stable_mosaic.version = 11 : i64} {
  func.func @mlp_decoder_kernel(%arg0: i32, %arg1: memref<16x32xbf16, #tpu.memory_space<vmem>>, %arg2: memref<32x128xbf16, #tpu.memory_space<vmem>>, %arg3: memref<8x128xf32, #tpu.memory_space<vmem>>, %arg4: memref<128x128xbf16, #tpu.memory_space<vmem>>, %arg5: memref<8x128xf32, #tpu.memory_space<vmem>>, %arg6: memref<16x128xf32, #tpu.memory_space<vmem>>) attributes {dimension_semantics = [#tpu.dimension_semantics<parallel>], iteration_bounds = array<i64: 1>, scalar_prefetch = 0 : i64, scratch_operands = 0 : i64, tpu.core_type = #tpu.core_type<tc>, window_params = [{transform_indices = @transform_0, window_bounds = array<i64: 16, 32>}, {pipeline_mode = #tpu.pipeline_mode<synchronous>, transform_indices = @transform_1, window_bounds = array<i64: 32, 128>}, {pipeline_mode = #tpu.pipeline_mode<synchronous>, transform_indices = @transform_2, window_bounds = array<i64: 8, 128>}, {pipeline_mode = #tpu.pipeline_mode<synchronous>, transform_indices = @transform_3, window_bounds = array<i64: 128, 128>}, {pipeline_mode = #tpu.pipeline_mode<synchronous>, transform_indices = @transform_4, window_bounds = array<i64: 8, 128>}, {transform_indices = @transform_5, window_bounds = array<i64: 16, 128>}]} {
    %c0 = arith.constant 0 : index
    %c0_0 = arith.constant 0 : index
    %0 = vector.load %arg1[%c0, %c0_0] : memref<16x32xbf16, #tpu.memory_space<vmem>>, vector<16x32xbf16>
    %c0_1 = arith.constant 0 : index
    %c0_2 = arith.constant 0 : index
    %1 = vector.load %arg2[%c0_1, %c0_2] : memref<32x128xbf16, #tpu.memory_space<vmem>>, vector<32x128xbf16>
    %cst = arith.constant dense<0.000000e+00> : vector<16x128xf32>
    %2 = tpu.matmul %0, %1, %cst {dimension_numbers = #tpu.dot_dimension_numbers<[1], [0], [0], [1], [0, 0, 1, 1], [], []>} : vector<16x32xbf16>, vector<32x128xbf16>, vector<16x128xf32> -> vector<16x128xf32>
    %c0_3 = arith.constant 0 : index
    %c0_4 = arith.constant 0 : index
    %3 = vector.load %arg3[%c0_3, %c0_4] : memref<8x128xf32, #tpu.memory_space<vmem>>, vector<8x128xf32>
    %4 = vector.extract_strided_slice %3 {offsets = [0, 0], sizes = [1, 128], strides = [1, 1]} : vector<8x128xf32> to vector<1x128xf32>
    %5 = vector.broadcast %4 : vector<1x128xf32> to vector<16x128xf32>
    %6 = arith.addf %2, %5 : vector<16x128xf32>
    %cst_5 = arith.constant 0.000000e+00 : f32
    %7 = vector.broadcast %cst_5 : f32 to vector<16x128xf32>
    %8 = arith.maximumf %6, %7 : vector<16x128xf32>
    %9 = arith.truncf %8 : vector<16x128xf32> to vector<16x128xbf16>
    %c0_6 = arith.constant 0 : index
    %c0_7 = arith.constant 0 : index
    %10 = vector.load %arg4[%c0_6, %c0_7] : memref<128x128xbf16, #tpu.memory_space<vmem>>, vector<128x128xbf16>
    %cst_8 = arith.constant dense<0.000000e+00> : vector<16x128xf32>
    %11 = tpu.matmul %9, %10, %cst_8 {dimension_numbers = #tpu.dot_dimension_numbers<[1], [0], [0], [1], [0, 0, 1, 1], [], []>} : vector<16x128xbf16>, vector<128x128xbf16>, vector<16x128xf32> -> vector<16x128xf32>
    %c0_9 = arith.constant 0 : index
    %c0_10 = arith.constant 0 : index
    %12 = vector.load %arg5[%c0_9, %c0_10] : memref<8x128xf32, #tpu.memory_space<vmem>>, vector<8x128xf32>
    %13 = vector.extract_strided_slice %12 {offsets = [0, 0], sizes = [1, 128], strides = [1, 1]} : vector<8x128xf32> to vector<1x128xf32>
    %14 = vector.broadcast %13 : vector<1x128xf32> to vector<16x128xf32>
    %15 = arith.addf %11, %14 : vector<16x128xf32>
    %c0_11 = arith.constant 0 : index
    %c0_12 = arith.constant 0 : index
    %16 = vector.load %arg6[%c0_11, %c0_12] : memref<16x128xf32, #tpu.memory_space<vmem>>, vector<16x128xf32>
    tpu.vector_store %arg6[%c0_11, %c0_12], %15 {strides = array<i32>} : memref<16x128xf32, #tpu.memory_space<vmem>>, vector<16x128xf32>,
    return
  }
  func.func @transform_0(%arg0: i32) -> (i32, i32) {
    %c0_i32 = arith.constant 0 : i32
    %c0_i32_0 = arith.constant 0 : i32
    return %arg0, %c0_i32 : i32, i32
  }
  func.func @transform_1(%arg0: i32) -> (i32, i32) {
    %c0_i32 = arith.constant 0 : i32
    %c0_i32_0 = arith.constant 0 : i32
    %c0_i32_1 = arith.constant 0 : i32
    return %c0_i32, %c0_i32_0 : i32, i32
  }
  func.func @transform_2(%arg0: i32) -> (i32, i32) {
    %c0_i32 = arith.constant 0 : i32
    %c0_i32_0 = arith.constant 0 : i32
    %c0_i32_1 = arith.constant 0 : i32
    return %c0_i32, %c0_i32_0 : i32, i32
  }
  func.func @transform_3(%arg0: i32) -> (i32, i32) {
    %c0_i32 = arith.constant 0 : i32
    %c0_i32_0 = arith.constant 0 : i32
    %c0_i32_1 = arith.constant 0 : i32
    return %c0_i32, %c0_i32_0 : i32, i32
  }
  func.func @transform_4(%arg0: i32) -> (i32, i32) {
    %c0_i32 = arith.constant 0 : i32
    %c0_i32_0 = arith.constant 0 : i32
    %c0_i32_1 = arith.constant 0 : i32
    return %c0_i32, %c0_i32_0 : i32, i32
  }
  func.func @transform_5(%arg0: i32) -> (i32, i32) {
    %c0_i32 = arith.constant 0 : i32
    %c0_i32_0 = arith.constant 0 : i32
    return %arg0, %c0_i32 : i32, i32
  }
}

</mosaic_0001>

<llo_original>
// kernel: tpu_custom_call.1
$region0: #{tpu_custom_call.1}
  #allocation0 [shape = 'u32[]', space=smem, size = 0x4, offset = 0x4, fixed_abs, tag = 'smem constant byte address 0x4 - core index']
  #allocation1 [shape = 'u32[144,128]{1,0:T(1,128)}', space=vmem, size = 0x12000, scoped, tag = 'internal scratch']
  %s0 = inlined_call_operand.hbm [shape: bf16[16,32], index: 0, kind: input, shape index: {}]
  %s1 = inlined_call_operand.hbm [shape: bf16[32,128], index: 1, kind: input, shape index: {}]
  %s2 = inlined_call_operand.hbm [shape: f32[8,128], index: 2, kind: input, shape index: {}]
  %s3 = inlined_call_operand.hbm [shape: bf16[128,128], index: 3, kind: input, shape index: {}]
  %s4 = inlined_call_operand.vmem [shape: f32[8,128], index: 4, kind: input, shape index: {}]
  %s5 = inlined_call_operand.hbm [shape: f32[16,128], index: 5, kind: output, shape index: {}]
  %s6 = sld [smem:[#allocation0]]
  $region46: #{tpu_custom_call.1} parent=0
    _
  %s8 = ssub.s32 1, %s6
  %s9 = scalar_select 0, %s8, %s6
  $region1: #{tpu_custom_call.1} parent=0
    #allocation2 [shape = 'u8[4096]{0}', space=vmem, size = 0x1000, scoped, tag = 'input window, operand 0, single buffered']
    #allocation3 [shape = 's32[1]{0}', space=sflag, size = 0x4, scoped, tag = 'scoped memory for tpu_custom_call.1']
    #allocation4 [shape = 's32[1]{0}', space=sflag, size = 0x4, scoped, tag = 'scoped memory for tpu_custom_call.1']
    #allocation5 [shape = 'u8[8192]{0}', space=vmem, size = 0x2000, scoped, tag = 'input window, operand 1, single buffered']
    #allocation6 [shape = 's32[1]{0}', space=sflag, size = 0x4, scoped, tag = 'scoped memory for tpu_custom_call.1']
    #allocation7 [shape = 'u8[4096]{0}', space=vmem, size = 0x1000, scoped, tag = 'input window, operand 2, single buffered']
    #allocation8 [shape = 'u8[32768]{0}', space=vmem, size = 0x8000, scoped, tag = 'input window, operand 3, single buffered']
    #allocation9 [shape = 's32[1]{0}', space=sflag, size = 0x4, scoped, tag = 'scoped memory for tpu_custom_call.1']
    #allocation10 [shape = 'u8[8192]{0}', space=vmem, size = 0x2000, scoped, tag = 'output window, operand 0, single buffered']
    %10 = vsyncpa [#allocation3], 0
    %11 = vsyncpa [#allocation6], 0
    %12 = vsyncpa [#allocation9], 0
    %13 = vsyncpa [#allocation4], 0
    // Predicated region
    $region2: #{tpu_custom_call.1} parent=1 // pred_check
      _
    $region3: #{tpu_custom_call.1} parent=1 // pred_check_branch
      %15 = sbr.rel (0) target = $region5
    $region4: #{tpu_custom_call.1} parent=1 // pred_region
      %s17 = ssub.s32 128, 128
      %18 = vsyncadd [#allocation3], %s17
      %s19 = sshll.u32 [#allocation2], 4
      %s20 = int_to_ptr.vmem [resolvable:$true] %s19
      %25 = dma.hbm_to_vmem [thread:$0]  %s0, 128, %s20, [#allocation3], 64, 64, 4
    $region5: #{tpu_custom_call.1} parent=1 // pred_fallthru
      _
    // Predicated region
    $region6: #{tpu_custom_call.1} parent=1 // pred_check
      _
    $region7: #{tpu_custom_call.1} parent=1 // pred_check_branch
      %27 = sbr.rel (0) target = $region9
    $region8: #{tpu_custom_call.1} parent=1 // pred_region
      %s29 = ssub.s32 256, 256
      %30 = vsyncadd [#allocation6], %s29
      %s31 = sshll.u32 [#allocation5], 4
      %s32 = int_to_ptr.vmem [resolvable:$true] %s31
      %37 = dma.hbm_to_vmem [thread:$0]  %s1, 256, %s32, [#allocation6], 64, 64, 4
    $region9: #{tpu_custom_call.1} parent=1 // pred_fallthru
      _
    // Predicated region
    $region10: #{tpu_custom_call.1} parent=1 // pred_check
      _
    $region11: #{tpu_custom_call.1} parent=1 // pred_check_branch
      %39 = sbr.rel (0) target = $region13
    $region12: #{tpu_custom_call.1} parent=1 // pred_region
      %s41 = ssub.s32 128, 128
      %42 = vsyncadd [#allocation6], %s41
      %s44 = sshll.u32 [#allocation7], 4
      %s45 = int_to_ptr.vmem [resolvable:$true] %s44
      %47 = dma.hbm_to_vmem [thread:$0]  %s2, 128, %s45, [#allocation6]
    $region13: #{tpu_custom_call.1} parent=1 // pred_fallthru
      _
    // Predicated region
    $region14: #{tpu_custom_call.1} parent=1 // pred_check
      _
    $region15: #{tpu_custom_call.1} parent=1 // pred_check_branch
      %49 = sbr.rel (0) target = $region17
    $region16: #{tpu_custom_call.1} parent=1 // pred_region
      %s51 = ssub.s32 1024, 1024
      %52 = vsyncadd [#allocation9], %s51
      %s53 = sshll.u32 [#allocation8], 4
      %s54 = int_to_ptr.vmem [resolvable:$true] %s53
      %59 = dma.hbm_to_vmem [thread:$0]  %s3, 1024, %s54, [#allocation9], 64, 64, 4
    $region17: #{tpu_custom_call.1} parent=1 // pred_fallthru
      _
    // Predicated region
    $region18: #{tpu_custom_call.1} parent=1 // pred_check
      _
    $region19: #{tpu_custom_call.1} parent=1 // pred_check_branch
      %61 = sbr.rel (0) target = $region21
    $region20: #{tpu_custom_call.1} parent=1 // pred_region
      _
    $region21: #{tpu_custom_call.1} parent=1 // pred_fallthru
      _
    // Predicated region
    $region22: #{tpu_custom_call.1} parent=1 // pred_check
      _
    $region23: #{tpu_custom_call.1} parent=1 // pred_check_branch
      %63 = sbr.rel (0) target = $region25
    $region24: #{tpu_custom_call.1} parent=1 // pred_region
      %64 = dma.done [#allocation3], 128
    $region25: #{tpu_custom_call.1} parent=1 // pred_fallthru
      _
    // Predicated region
    $region26: #{tpu_custom_call.1} parent=1 // pred_check
      _
    $region27: #{tpu_custom_call.1} parent=1 // pred_check_branch
      %66 = sbr.rel (0) target = $region29
    $region28: #{tpu_custom_call.1} parent=1 // pred_region
      %67 = dma.done [#allocation6], 256
    $region29: #{tpu_custom_call.1} parent=1 // pred_fallthru
      _
    // Predicated region
    $region30: #{tpu_custom_call.1} parent=1 // pred_check
      _
    $region31: #{tpu_custom_call.1} parent=1 // pred_check_branch
      %69 = sbr.rel (0) target = $region33
    $region32: #{tpu_custom_call.1} parent=1 // pred_region
      %70 = dma.done [#allocation6], 128
    $region33: #{tpu_custom_call.1} parent=1 // pred_fallthru
      _
    // Predicated region
    $region34: #{tpu_custom_call.1} parent=1 // pred_check
      _
    $region35: #{tpu_custom_call.1} parent=1 // pred_check_branch
      %72 = sbr.rel (0) target = $region37
    $region36: #{tpu_custom_call.1} parent=1 // pred_region
      %73 = dma.done [#allocation9], 1024
    $region37: #{tpu_custom_call.1} parent=1 // pred_fallthru
      _
    %v75 = vld [vmem:[#allocation2] sm:$0xf]
    %v76 = vld [vmem:[#allocation2 + $0x4] sm:$0xf]
    %v77 = vld [vmem:[#allocation5] sm:$0xf]
    %v78 = vld [vmem:[#allocation5 + $0x4] sm:$0xf]
    %v79 = vld [vmem:[#allocation5 + $0x8] sm:$0xf]
    %v80 = vld [vmem:[#allocation5 + $0xc] sm:$0xf]
    %v81 = vld [vmem:[#allocation7] sm:$0xff]
    %v82 = vlaneseq
    %v83 = vshrl.u32 %v82, 7
    %v84 = vsub.s32 0, %v83
    %v85 = vrot.slane %v81, %v84
    %v88 = vunpack.c.l.b16 %v75
    %v89 = vunpack.c.l.b16 %v76
    %v90 = vpack.c.b16 %v89, %v88
    %v95 = vunpack.c.l.b16 %v77
    %v96 = vunpack.c.l.b16 %v78
    %v97 = vunpack.c.l.b16 %v79
    %v98 = vunpack.c.l.b16 %v80
    %v99 = vpack.c.b16 %v96, %v95
    %v100 = vpack.c.b16 %v98, %v97
    %vm103 = vcmask 261120
    %v105 = vsel %vm103, %v90, 0
    %107 = vmatprep.subr.bf16.mxu0 0
    %108 = vmatpush1.bf16.msra.mxu0 %v99
    %109 = vmatprep.subr.bf16.mxu0 0
    %110 = vmatpush1.bf16.msra.mxu0 %v100
    %111 = vmatprep.subr.bf16.mxu0 0
    %112 = vmatpush1.bf16.msra.mxu0 0
    %113 = vmatprep.subr.bf16.mxu0 0
    %114 = vmatpush1.bf16.msra.mxu0 0
    %115 = vmatprep.subr.bf16.mxu0 0
    %116 = vmatpush1.bf16.msra.mxu0 0
    %117 = vmatprep.subr.bf16.mxu0 0
    %118 = vmatpush1.bf16.msra.mxu0 0
    %119 = vmatprep.subr.bf16.mxu0 0
    %120 = vmatpush1.bf16.msra.mxu0 0
    %121 = vmatprep.subr.bf16.mxu0 0
    %122 = vmatpush1.bf16.msra.mxu0 0
    %123 = vmatprep.subr.bf16.mxu0 0
    %124 = vmatpush1.bf16.msra.mxu0 0
    %125 = vmatprep.subr.bf16.mxu0 0
    %126 = vmatpush1.bf16.msra.mxu0 0
    %127 = vmatprep.subr.bf16.mxu0 0
    %128 = vmatpush1.bf16.msra.mxu0 0
    %129 = vmatprep.subr.bf16.mxu0 0
    %130 = vmatpush1.bf16.msra.mxu0 0
    %131 = vmatprep.subr.bf16.mxu0 0
    %132 = vmatpush1.bf16.msra.mxu0 0
    %133 = vmatprep.subr.bf16.mxu0 0
    %134 = vmatpush1.bf16.msra.mxu0 0
    %135 = vmatprep.subr.bf16.mxu0 0
    %136 = vmatpush1.bf16.msra.mxu0 0
    %137 = vmatprep.subr.bf16.mxu0 0
    %138 = vmatpush1.bf16.msra.mxu0 0
    %139 = vmatprep.mubr.bf16.mxu0 0
    %140 = vmatmul.mubr.bf16.gmra.mrb[0].mxu0 %v105
    %v141 = vpop.f32.mrb[0].mxu0
    %v142 = vadd.f32 %v85, %v141
    %v143 = vpop.f32.mrb[0].mxu0
    %v144 = vpop.f32.mrb[0].mxu0
    %v145 = vadd.f32 %v85, %v144
    %v146 = vpop.f32.mrb[0].mxu0
    %147 = vdwg.mxu0
    %v148 = vmax.f32 %v142, 0.0
    %v149 = vmax.f32 %v145, 0.0
    %v150 = vpack.c.bf16 %v149, %v148
    %v151 = vld [vmem:[#allocation8] sm:$0xf]
    %v152 = vld [vmem:[#allocation8 + $0x4] sm:$0xf]
    %v153 = vld [vmem:[#allocation8 + $0x8] sm:$0xf]
    %v154 = vld [vmem:[#allocation8 + $0xc] sm:$0xf]
    %v155 = vld [vmem:[#allocation8 + $0x10] sm:$0xf]
    %v156 = vld [vmem:[#allocation8 + $0x14] sm:$0xf]
    %v157 = vld [vmem:[#allocation8 + $0x18] sm:$0xf]
    %v158 = vld [vmem:[#allocation8 + $0x1c] sm:$0xf]
    %v159 = vld [vmem:[#allocation8 + $0x20] sm:$0xf]
    %v160 = vld [vmem:[#allocation8 + $0x24] sm:$0xf]
    %v161 = vld [vmem:[#allocation8 + $0x28] sm:$0xf]
    %v162 = vld [vmem:[#allocation8 + $0x2c] sm:$0xf]
    %v163 = vld [vmem:[#allocation8 + $0x30] sm:$0xf]
    %v164 = vld [vmem:[#allocation8 + $0x34] sm:$0xf]
    %v165 = vld [vmem:[#allocation8 + $0x38] sm:$0xf]
    %v166 = vld [vmem:[#allocation8 + $0x3c] sm:$0xf]
    %v167 = vld [vmem:[%s4] sm:$0xff]
    %v168 = vlaneseq
    %v169 = vshrl.u32 %v168, 7
    %v170 = vsub.s32 0, %v169
    %v171 = vrot.slane %v167, %v170
    %v188 = vunpack.c.l.b16 %v151
    %v189 = vunpack.c.l.b16 %v152
    %v190 = vunpack.c.l.b16 %v153
    %v191 = vunpack.c.l.b16 %v154
    %v192 = vunpack.c.l.b16 %v155
    %v193 = vunpack.c.l.b16 %v156
    %v194 = vunpack.c.l.b16 %v157
    %v195 = vunpack.c.l.b16 %v158
    %v196 = vunpack.c.l.b16 %v159
    %v197 = vunpack.c.l.b16 %v160
    %v198 = vunpack.c.l.b16 %v161
    %v199 = vunpack.c.l.b16 %v162
    %v200 = vunpack.c.l.b16 %v163
    %v201 = vunpack.c.l.b16 %v164
    %v202 = vunpack.c.l.b16 %v165
    %v203 = vunpack.c.l.b16 %v166
    %v204 = vpack.c.b16 %v189, %v188
    %v205 = vpack.c.b16 %v191, %v190
    %v206 = vpack.c.b16 %v193, %v192
    %v207 = vpack.c.b16 %v195, %v194
    %v208 = vpack.c.b16 %v197, %v196
    %v209 = vpack.c.b16 %v199, %v198
    %v210 = vpack.c.b16 %v201, %v200
    %v211 = vpack.c.b16 %v203, %v202
    %220 = vmatprep.subr.bf16.mxu0 0
    %221 = vmatpush1.bf16.msra.mxu0 %v204
    %222 = vmatprep.subr.bf16.mxu0 0
    %223 = vmatpush1.bf16.msra.mxu0 %v205
    %224 = vmatprep.subr.bf16.mxu0 0
    %225 = vmatpush1.bf16.msra.mxu0 %v206
    %226 = vmatprep.subr.bf16.mxu0 0
    %227 = vmatpush1.bf16.msra.mxu0 %v207
    %228 = vmatprep.subr.bf16.mxu0 0
    %229 = vmatpush1.bf16.msra.mxu0 %v208
    %230 = vmatprep.subr.bf16.mxu0 0
    %231 = vmatpush1.bf16.msra.mxu0 %v209
    %232 = vmatprep.subr.bf16.mxu0 0
    %233 = vmatpush1.bf16.msra.mxu0 %v210
    %234 = vmatprep.subr.bf16.mxu0 0
    %235 = vmatpush1.bf16.msra.mxu0 %v211
    %236 = vmatprep.subr.bf16.mxu0 0
    %237 = vmatpush1.bf16.msra.mxu0 0
    %238 = vmatprep.subr.bf16.mxu0 0
    %239 = vmatpush1.bf16.msra.mxu0 0
    %240 = vmatprep.subr.bf16.mxu0 0
    %241 = vmatpush1.bf16.msra.mxu0 0
    %242 = vmatprep.subr.bf16.mxu0 0
    %243 = vmatpush1.bf16.msra.mxu0 0
    %244 = vmatprep.subr.bf16.mxu0 0
    %245 = vmatpush1.bf16.msra.mxu0 0
    %246 = vmatprep.subr.bf16.mxu0 0
    %247 = vmatpush1.bf16.msra.mxu0 0
    %248 = vmatprep.subr.bf16.mxu0 0
    %249 = vmatpush1.bf16.msra.mxu0 0
    %250 = vmatprep.subr.bf16.mxu0 0
    %251 = vmatpush1.bf16.msra.mxu0 0
    %252 = vmatprep.mubr.bf16.mxu0 0
    %253 = vmatmul.mubr.bf16.gmra.mrb[0].mxu0 %v150
    %v254 = vpop.f32.mrb[0].mxu0
    %v255 = vadd.f32 %v171, %v254
    %v256 = vpop.f32.mrb[0].mxu0
    %v257 = vpop.f32.mrb[0].mxu0
    %v258 = vadd.f32 %v171, %v257
    %v259 = vpop.f32.mrb[0].mxu0
    %260 = vdwg.mxu0
    %261 = vst [vmem:[#allocation10] sm:$0xff] %v255
    %262 = vst [vmem:[#allocation10 + $0x8] sm:$0xff] %v258
    // Predicated region
    $region38: #{tpu_custom_call.1} parent=1 // pred_check
      _
    $region39: #{tpu_custom_call.1} parent=1 // pred_check_branch
      %264 = sbr.rel (0) target = $region41
    $region40: #{tpu_custom_call.1} parent=1 // pred_region
      %s266 = ssub.s32 256, 256
      %267 = vsyncadd [#allocation4], %s266
      %s268 = sshll.u32 [#allocation10], 4
      %s269 = int_to_ptr.vmem [resolvable:$true] %s268
      %274 = dma.vmem_to_hbm [thread:$0]  %s269, 256, %s5, [#allocation4], 128, 128, 8
    $region41: #{tpu_custom_call.1} parent=1 // pred_fallthru
      _
    // Predicated region
    $region42: #{tpu_custom_call.1} parent=1 // pred_check
      _
    $region43: #{tpu_custom_call.1} parent=1 // pred_check_branch
      %276 = sbr.rel (0) target = $region45
    $region44: #{tpu_custom_call.1} parent=1 // pred_region
      %277 = dma.done [#allocation4], 256
    $region45: #{tpu_custom_call.1} parent=1 // pred_fallthru
      _
    %278 = vsyncpa [#allocation3], 1
    %279 = vsyncpa [#allocation6], 1
    %280 = vsyncpa [#allocation9], 1
    %281 = vsyncpa [#allocation4], 1

</llo_original>
